<compile_context>
chip_gen: v7x
topology: tpu7x:2x2x1
jax: 0.10.0
libtpu: 0.0.40
codegen_flags: <defaults>
</compile_context>

<pallas_src>
import jax
import jax.numpy as jnp
from jax.experimental import pallas as pl
from jax.experimental.pallas import tpu as pltpu


_LANE = 128


def _round_up(n, m):
    return ((n + m - 1) // m) * m


def _choose_tiling(batch, max_tile):
    """Pick (tile_width, padded_batch, n_tiles, chunk) for the lane (batch) axis."""
    bp_min = _round_up(max(batch, 1), _LANE)
    chunk = 256 if bp_min >= 256 else _LANE          # in-kernel lane chunk width
    n = pl.cdiv(bp_min, max_tile)
    if bp_min >= 2 * chunk:
        n = max(n, 2)                                # give v7x's 2 TCs work each
    if n > 1 and n % 2 == 1:
        n += 1                                       # even tile count for 2-TC balance
    tb = _round_up(pl.cdiv(bp_min, n), chunk)        # tile is a multiple of chunk
    return tb, tb * n, n, chunk


def _make_qnet_kernel(chunk, n_chunks):
    def kernel(x_ref, w1_ref, b1_ref, w2_ref, b2_ref,
               w3_ref, b3_ref, w4_ref, b4_ref, out_ref):
        # Hoisted once per batch tile: bf16 weight copies for the MXU and
        # lane-broadcast biases (do NOT put these inside the chunk loop;
        # broadcast_in_dim is not CSE'd).
        w1 = w1_ref[...].astype(jnp.bfloat16)
        w2 = w2_ref[...].astype(jnp.bfloat16)
        w3 = w3_ref[...].astype(jnp.bfloat16)
        w4 = w4_ref[...].astype(jnp.bfloat16)
        b1 = jnp.broadcast_to(b1_ref[...], (b1_ref.shape[0], chunk))
        b2 = jnp.broadcast_to(b2_ref[...], (b2_ref.shape[0], chunk))
        b3 = jnp.broadcast_to(b3_ref[...], (b3_ref.shape[0], chunk))
        b4 = jnp.broadcast_to(b4_ref[...], (b4_ref.shape[0], chunk))

        # Fully-unrolled chunk loop (trip count is a trace-time constant, so
        # this emits the same straight-line code as lax.fori_loop(unroll=True)
        # while keeping every lane offset a static, chunk-aligned constant).
        for c in range(n_chunks):
            off = c * chunk
            x = x_ref[:, pl.ds(off, chunk)].astype(jnp.bfloat16)

            # fc1 + relu
            h1 = jnp.dot(w1, x, preferred_element_type=jnp.float32) + b1
            h1 = jnp.maximum(h1, 0.0)
            # fc2 + relu, residual (x = relu(fc2(x)) + y)
            h2 = jnp.dot(w2, h1.astype(jnp.bfloat16),
                         preferred_element_type=jnp.float32) + b2
            h2 = jnp.maximum(h2, 0.0) + h1
            # fc3 + relu, residual
            h3 = jnp.dot(w3, h2.astype(jnp.bfloat16),
                         preferred_element_type=jnp.float32) + b3
            h3 = jnp.maximum(h3, 0.0) + h2
            # fc4 (no activation); padded output rows are exactly zero.
            out = jnp.dot(w4, h3.astype(jnp.bfloat16),
                          preferred_element_type=jnp.float32) + b4
            out_ref[:, pl.ds(off, chunk)] = out.astype(out_ref.dtype)

    return kernel


def qnet_apply_feature_major(xt, params, *, max_tile=4096):
    """Forward pass on feature-major activations.

    xt: (state_size, batch) float32.  Returns (action_size, batch) float32.
    Keeping activations feature-major end to end avoids the transpose/pad HBM
    round trips the PyTorch-layout wrapper adds.
    """
    S, B = xt.shape
    H1 = params["w1"].shape[0]
    H2 = params["w2"].shape[0]
    H3 = params["w3"].shape[0]
    A = params["w4"].shape[0]
    Ap = _round_up(A, 8)              # full sublane tile -> unmasked stores

    TB, Bp, n_tiles, chunk = _choose_tiling(B, max_tile)
    if Bp != B:
        xt = jnp.pad(xt, ((0, 0), (0, Bp - B)))

    w4, b4 = params["w4"], params["b4"]
    if Ap != A:
        w4 = jnp.pad(w4, ((0, Ap - A), (0, 0)))
        b4 = jnp.pad(b4, ((0, Ap - A), (0, 0)))

    weights = (params["w1"], params["b1"], params["w2"], params["b2"],
               params["w3"], params["b3"], w4, b4)

    # Weights/biases: full-extent blocks with constant index_maps -> DMA'd into
    # VMEM once, resident across all batch tiles.
    def const_spec(a):
        return pl.BlockSpec(a.shape, lambda i: (0, 0))

    wbytes = 4 * sum(int(a.size) for a in weights)
    cost = pl.CostEstimate(
        flops=2 * Bp * (S * H1 + H1 * H2 + H2 * H3 + H3 * Ap),
        transcendentals=0,
        bytes_accessed=4 * Bp * (S + Ap) + wbytes,
    )

    out = pl.pallas_call(
        _make_qnet_kernel(chunk, TB // chunk),
        out_shape=jax.ShapeDtypeStruct((Ap, Bp), jnp.float32),
        grid=(n_tiles,),
        in_specs=[pl.BlockSpec((S, TB), lambda i: (0, i))]
                 + [const_spec(a) for a in weights],
        out_specs=pl.BlockSpec((Ap, TB), lambda i: (0, i)),
        compiler_params=pltpu.CompilerParams(
            dimension_semantics=("parallel",)),
        cost_estimate=cost,
    )(xt, *weights)

    return out[:A, :B]


def qnetwork_residual32_forward(x, params, *, max_tile=4096):
    """PyTorch-layout wrapper: x (batch, state_size) -> (batch, action_size).

    TODO(synk): for peak HBM efficiency in an RL training loop, keep
    activations feature-major end to end and call qnet_apply_feature_major
    directly; this wrapper adds one transpose on each side for compatibility.
    """
    return qnet_apply_feature_major(x.T, params, max_tile=max_tile).T


def init_params(key, state_size, action_size,
                fc1_units=32, fc2_units=32, fc3_units=32):
    """PyTorch nn.Linear default init: U(-1/sqrt(fan_in), 1/sqrt(fan_in)).
    Weights stored as (out_features, in_features), biases as (out_features, 1)."""
    dims = [(state_size, fc1_units), (fc1_units, fc2_units),
            (fc2_units, fc3_units), (fc3_units, action_size)]
    params = {}
    for i, (fan_in, fan_out) in enumerate(dims, start=1):
        key, kw, kb = jax.random.split(key, 3)
        bound = 1.0 / jnp.sqrt(float(fan_in))
        params[f"w{i}"] = jax.random.uniform(
            kw, (fan_out, fan_in), jnp.float32, minval=-bound, maxval=bound)
        params[f"b{i}"] = jax.random.uniform(
            kb, (fan_out, 1), jnp.float32, minval=-bound, maxval=bound)
    return params


def reference_forward(x, p):
    """Plain-JAX reference of the PyTorch forward, for a sanity check."""
    h1 = jnp.maximum(x @ p["w1"].T + p["b1"].T, 0.0)
    h2 = jnp.maximum(h1 @ p["w2"].T + p["b2"].T, 0.0) + h1
    h3 = jnp.maximum(h2 @ p["w3"].T + p["b3"].T, 0.0) + h2
    return h3 @ p["w4"].T + p["b4"].T


if __name__ == "__main__":
    batch = 2
    state_size = 8
    action_size = 4

    key = jax.random.PRNGKey(0)
    key, kx = jax.random.split(key)
    x = jax.random.normal(kx, (batch, state_size), jnp.float32)
    params = init_params(key, state_size, action_size)

    # Small-batch check (module-consistent shapes).  Tolerance accounts for the
    # bf16 MXU operands (f32 accumulation).
    out = jax.block_until_ready(qnetwork_residual32_forward(x, params))
    ref = reference_forward(x, params)
    assert out.shape == (batch, action_size)
    assert jnp.allclose(out, ref, atol=3e-2, rtol=3e-2), \
        f"max abs diff {float(jnp.max(jnp.abs(out - ref)))}"

    # Multi-tile batch check: exercises the grid, resident weights, even-tile
    # fixup (3000/1024 -> 4 tiles of 768) and batch padding.
    xb = jax.random.normal(jax.random.PRNGKey(1), (3000, state_size), jnp.float32)
    outb = jax.block_until_ready(
        qnetwork_residual32_forward(xb, params, max_tile=1024))
    refb = reference_forward(xb, params)
    assert outb.shape == (3000, action_size)
    assert jnp.allclose(outb, refb, atol=3e-2, rtol=3e-2), \
        f"max abs diff {float(jnp.max(jnp.abs(outb - refb)))}"

    # Feature-major entry point (no wrapper transposes), default tiling.
    outf = jax.block_until_ready(qnet_apply_feature_major(xb.T, params))
    assert outf.shape == (action_size, 3000)
    assert jnp.allclose(outf.T, refb, atol=3e-2, rtol=3e-2), \
        f"max abs diff {float(jnp.max(jnp.abs(outf.T - refb)))}"

    print("KERNEL_OK")
</pallas_src>

<mosaic_0001>
module attributes {stable_mosaic.version = 11 : i64} {
  func.func @kernel(%arg0: i32, %arg1: memref<8x128xf32, #tpu.memory_space<vmem>>, %arg2: memref<32x8xf32, #tpu.memory_space<vmem>>, %arg3: memref<32x1xf32, #tpu.memory_space<vmem>>, %arg4: memref<32x32xf32, #tpu.memory_space<vmem>>, %arg5: memref<32x1xf32, #tpu.memory_space<vmem>>, %arg6: memref<32x32xf32, #tpu.memory_space<vmem>>, %arg7: memref<32x1xf32, #tpu.memory_space<vmem>>, %arg8: memref<8x32xf32, #tpu.memory_space<vmem>>, %arg9: memref<8x1xf32, #tpu.memory_space<vmem>>, %arg10: memref<8x128xf32, #tpu.memory_space<vmem>>) attributes {dimension_semantics = [#tpu.dimension_semantics<parallel>], iteration_bounds = array<i64: 1>, scalar_prefetch = 0 : i64, scratch_operands = 0 : i64, tpu.core_type = #tpu.core_type<tc>, window_params = [{transform_indices = @transform_0, window_bounds = array<i64: 8, 128>}, {pipeline_mode = #tpu.pipeline_mode<synchronous>, transform_indices = @transform_1, window_bounds = array<i64: 32, 8>}, {pipeline_mode = #tpu.pipeline_mode<synchronous>, transform_indices = @transform_2, window_bounds = array<i64: 32, 1>}, {pipeline_mode = #tpu.pipeline_mode<synchronous>, transform_indices = @transform_3, window_bounds = array<i64: 32, 32>}, {pipeline_mode = #tpu.pipeline_mode<synchronous>, transform_indices = @transform_4, window_bounds = array<i64: 32, 1>}, {pipeline_mode = #tpu.pipeline_mode<synchronous>, transform_indices = @transform_5, window_bounds = array<i64: 32, 32>}, {pipeline_mode = #tpu.pipeline_mode<synchronous>, transform_indices = @transform_6, window_bounds = array<i64: 32, 1>}, {pipeline_mode = #tpu.pipeline_mode<synchronous>, transform_indices = @transform_7, window_bounds = array<i64: 8, 32>}, {pipeline_mode = #tpu.pipeline_mode<synchronous>, transform_indices = @transform_8, window_bounds = array<i64: 8, 1>}, {transform_indices = @transform_9, window_bounds = array<i64: 8, 128>}]} {
    %c0 = arith.constant 0 : index
    %c0_0 = arith.constant 0 : index
    %0 = vector.load %arg2[%c0, %c0_0] : memref<32x8xf32, #tpu.memory_space<vmem>>, vector<32x8xf32>
    %1 = arith.truncf %0 : vector<32x8xf32> to vector<32x8xbf16>
    %c0_1 = arith.constant 0 : index
    %c0_2 = arith.constant 0 : index
    %2 = vector.load %arg4[%c0_1, %c0_2] : memref<32x32xf32, #tpu.memory_space<vmem>>, vector<32x32xf32>
    %3 = arith.truncf %2 : vector<32x32xf32> to vector<32x32xbf16>
    %c0_3 = arith.constant 0 : index
    %c0_4 = arith.constant 0 : index
    %4 = vector.load %arg6[%c0_3, %c0_4] : memref<32x32xf32, #tpu.memory_space<vmem>>, vector<32x32xf32>
    %5 = arith.truncf %4 : vector<32x32xf32> to vector<32x32xbf16>
    %c0_5 = arith.constant 0 : index
    %c0_6 = arith.constant 0 : index
    %6 = vector.load %arg8[%c0_5, %c0_6] : memref<8x32xf32, #tpu.memory_space<vmem>>, vector<8x32xf32>
    %7 = arith.truncf %6 : vector<8x32xf32> to vector<8x32xbf16>
    %c0_7 = arith.constant 0 : index
    %c0_8 = arith.constant 0 : index
    %8 = vector.load %arg3[%c0_7, %c0_8] : memref<32x1xf32, #tpu.memory_space<vmem>>, vector<32x1xf32>
    %9 = vector.shape_cast %8 : vector<32x1xf32> to vector<32x1xf32>
    %10 = vector.broadcast %9 : vector<32x1xf32> to vector<32x128xf32>
    %c0_9 = arith.constant 0 : index
    %c0_10 = arith.constant 0 : index
    %11 = vector.load %arg5[%c0_9, %c0_10] : memref<32x1xf32, #tpu.memory_space<vmem>>, vector<32x1xf32>
    %12 = vector.shape_cast %11 : vector<32x1xf32> to vector<32x1xf32>
    %13 = vector.broadcast %12 : vector<32x1xf32> to vector<32x128xf32>
    %c0_11 = arith.constant 0 : index
    %c0_12 = arith.constant 0 : index
    %14 = vector.load %arg7[%c0_11, %c0_12] : memref<32x1xf32, #tpu.memory_space<vmem>>, vector<32x1xf32>
    %15 = vector.shape_cast %14 : vector<32x1xf32> to vector<32x1xf32>
    %16 = vector.broadcast %15 : vector<32x1xf32> to vector<32x128xf32>
    %c0_13 = arith.constant 0 : index
    %c0_14 = arith.constant 0 : index
    %17 = vector.load %arg9[%c0_13, %c0_14] : memref<8x1xf32, #tpu.memory_space<vmem>>, vector<8x1xf32>
    %18 = vector.shape_cast %17 : vector<8x1xf32> to vector<8x1xf32>
    %19 = vector.broadcast %18 : vector<8x1xf32> to vector<8x128xf32>
    %c0_15 = arith.constant 0 : index
    %c0_16 = arith.constant 0 : index
    %20 = vector.load %arg1[%c0_15, %c0_16] : memref<8x128xf32, #tpu.memory_space<vmem>>, vector<8x128xf32>
    %21 = arith.truncf %20 : vector<8x128xf32> to vector<8x128xbf16>
    %cst = arith.constant dense<0.000000e+00> : vector<32x128xf32>
    %22 = tpu.matmul %1, %21, %cst {dimension_numbers = #tpu.dot_dimension_numbers<[1], [0], [0], [1], [0, 0, 1, 1], [], []>} : vector<32x8xbf16>, vector<8x128xbf16>, vector<32x128xf32> -> vector<32x128xf32>
    %23 = arith.addf %22, %10 : vector<32x128xf32>
    %cst_17 = arith.constant 0.000000e+00 : f32
    %24 = vector.broadcast %cst_17 : f32 to vector<32x128xf32>
    %25 = arith.maximumf %23, %24 : vector<32x128xf32>
    %26 = arith.truncf %25 : vector<32x128xf32> to vector<32x128xbf16>
    %cst_18 = arith.constant dense<0.000000e+00> : vector<32x128xf32>
    %27 = tpu.matmul %3, %26, %cst_18 {dimension_numbers = #tpu.dot_dimension_numbers<[1], [0], [0], [1], [0, 0, 1, 1], [], []>} : vector<32x32xbf16>, vector<32x128xbf16>, vector<32x128xf32> -> vector<32x128xf32>
    %28 = arith.addf %27, %13 : vector<32x128xf32>
    %cst_19 = arith.constant 0.000000e+00 : f32
    %29 = vector.broadcast %cst_19 : f32 to vector<32x128xf32>
    %30 = arith.maximumf %28, %29 : vector<32x128xf32>
    %31 = arith.addf %30, %25 : vector<32x128xf32>
    %32 = arith.truncf %31 : vector<32x128xf32> to vector<32x128xbf16>
    %cst_20 = arith.constant dense<0.000000e+00> : vector<32x128xf32>
    %33 = tpu.matmul %5, %32, %cst_20 {dimension_numbers = #tpu.dot_dimension_numbers<[1], [0], [0], [1], [0, 0, 1, 1], [], []>} : vector<32x32xbf16>, vector<32x128xbf16>, vector<32x128xf32> -> vector<32x128xf32>
    %34 = arith.addf %33, %16 : vector<32x128xf32>
    %cst_21 = arith.constant 0.000000e+00 : f32
    %35 = vector.broadcast %cst_21 : f32 to vector<32x128xf32>
    %36 = arith.maximumf %34, %35 : vector<32x128xf32>
    %37 = arith.addf %36, %31 : vector<32x128xf32>
    %38 = arith.truncf %37 : vector<32x128xf32> to vector<32x128xbf16>
    %cst_22 = arith.constant dense<0.000000e+00> : vector<8x128xf32>
    %39 = tpu.matmul %7, %38, %cst_22 {dimension_numbers = #tpu.dot_dimension_numbers<[1], [0], [0], [1], [0, 0, 1, 1], [], []>} : vector<8x32xbf16>, vector<32x128xbf16>, vector<8x128xf32> -> vector<8x128xf32>
    %40 = arith.addf %39, %19 : vector<8x128xf32>
    %c0_23 = arith.constant 0 : index
    %c0_24 = arith.constant 0 : index
    %41 = vector.load %arg10[%c0_23, %c0_24] : memref<8x128xf32, #tpu.memory_space<vmem>>, vector<8x128xf32>
    tpu.vector_store %arg10[%c0_23, %c0_24], %40 {strides = array<i32>} : memref<8x128xf32, #tpu.memory_space<vmem>>, vector<8x128xf32>,
    return
  }
  func.func @transform_0(%arg0: i32) -> (i32, i32) {
    %c0_i32 = arith.constant 0 : i32
    %c0_i32_0 = arith.constant 0 : i32
    return %c0_i32, %arg0 : i32, i32
  }
  func.func @transform_1(%arg0: i32) -> (i32, i32) {
    %c0_i32 = arith.constant 0 : i32
    %c0_i32_0 = arith.constant 0 : i32
    %c0_i32_1 = arith.constant 0 : i32
    return %c0_i32, %c0_i32_0 : i32, i32
  }
  func.func @transform_2(%arg0: i32) -> (i32, i32) {
    %c0_i32 = arith.constant 0 : i32
    %c0_i32_0 = arith.constant 0 : i32
    %c0_i32_1 = arith.constant 0 : i32
    return %c0_i32, %c0_i32_0 : i32, i32
  }
  func.func @transform_3(%arg0: i32) -> (i32, i32) {
    %c0_i32 = arith.constant 0 : i32
    %c0_i32_0 = arith.constant 0 : i32
    %c0_i32_1 = arith.constant 0 : i32
    return %c0_i32, %c0_i32_0 : i32, i32
  }
  func.func @transform_4(%arg0: i32) -> (i32, i32) {
    %c0_i32 = arith.constant 0 : i32
    %c0_i32_0 = arith.constant 0 : i32
    %c0_i32_1 = arith.constant 0 : i32
    return %c0_i32, %c0_i32_0 : i32, i32
  }
  func.func @transform_5(%arg0: i32) -> (i32, i32) {
    %c0_i32 = arith.constant 0 : i32
    %c0_i32_0 = arith.constant 0 : i32
    %c0_i32_1 = arith.constant 0 : i32
    return %c0_i32, %c0_i32_0 : i32, i32
  }
  func.func @transform_6(%arg0: i32) -> (i32, i32) {
    %c0_i32 = arith.constant 0 : i32
    %c0_i32_0 = arith.constant 0 : i32
    %c0_i32_1 = arith.constant 0 : i32
    return %c0_i32, %c0_i32_0 : i32, i32
  }
  func.func @transform_7(%arg0: i32) -> (i32, i32) {
    %c0_i32 = arith.constant 0 : i32
    %c0_i32_0 = arith.constant 0 : i32
    %c0_i32_1 = arith.constant 0 : i32
    return %c0_i32, %c0_i32_0 : i32, i32
  }
  func.func @transform_8(%arg0: i32) -> (i32, i32) {
    %c0_i32 = arith.constant 0 : i32
    %c0_i32_0 = arith.constant 0 : i32
    %c0_i32_1 = arith.constant 0 : i32
    return %c0_i32, %c0_i32_0 : i32, i32
  }
  func.func @transform_9(%arg0: i32) -> (i32, i32) {
    %c0_i32 = arith.constant 0 : i32
    %c0_i32_0 = arith.constant 0 : i32
    return %c0_i32, %arg0 : i32, i32
  }
}

</mosaic_0001>

<llo_original>
// kernel: tpu_custom_call.1
$region0: #{tpu_custom_call.1}
  #allocation0 [shape = 'u32[]', space=smem, size = 0x4, offset = 0x4, fixed_abs, tag = 'smem constant byte address 0x4 - core index']
  #allocation1 [shape = 'u32[144,128]{1,0:T(1,128)}', space=vmem, size = 0x12000, scoped, tag = 'internal scratch']
  %s0 = inlined_call_operand.vmem [shape: f32[8,128], index: 0, kind: input, shape index: {}]
  %s1 = inlined_call_operand.vmem [shape: f32[32,8], index: 1, kind: input, shape index: {}]
  %s2 = inlined_call_operand.vmem [shape: f32[32,1], index: 2, kind: input, shape index: {}]
  %s3 = inlined_call_operand.vmem [shape: f32[32,32], index: 3, kind: input, shape index: {}]
  %s4 = inlined_call_operand.vmem [shape: f32[32,1], index: 4, kind: input, shape index: {}]
  %s5 = inlined_call_operand.vmem [shape: f32[32,32], index: 5, kind: input, shape index: {}]
  %s6 = inlined_call_operand.vmem [shape: f32[32,1], index: 6, kind: input, shape index: {}]
  %s7 = inlined_call_operand.vmem [shape: f32[8,32], index: 7, kind: input, shape index: {}]
  %s8 = inlined_call_operand.vmem [shape: f32[8,1], index: 8, kind: input, shape index: {}]
  %s9 = inlined_call_operand.hbm [shape: f32[8,128], index: 9, kind: output, shape index: {}]
  %s10 = sld [smem:[#allocation0]]
  $region46: #{tpu_custom_call.1} parent=0
    _
  %s12 = ssub.s32 1, %s10
  %s13 = scalar_select 0, %s12, %s10
  $region1: #{tpu_custom_call.1} parent=0
    #allocation2 [shape = 'u8[4096]{0}', space=vmem, size = 0x1000, scoped, tag = 'output window, operand 0, single buffered']
    #allocation3 [shape = 's32[1]{0}', space=sflag, size = 0x4, scoped, tag = 'scoped memory for tpu_custom_call.1']
    %14 = vsyncpa [#allocation3], 0
    // Predicated region
    $region2: #{tpu_custom_call.1} parent=1 // pred_check
      _
    $region3: #{tpu_custom_call.1} parent=1 // pred_check_branch
      %16 = sbr.rel (0) target = $region5
    $region4: #{tpu_custom_call.1} parent=1 // pred_region
      _
    $region5: #{tpu_custom_call.1} parent=1 // pred_fallthru
      _
    // Predicated region
    $region6: #{tpu_custom_call.1} parent=1 // pred_check
      _
    $region7: #{tpu_custom_call.1} parent=1 // pred_check_branch
      %18 = sbr.rel (0) target = $region9
    $region8: #{tpu_custom_call.1} parent=1 // pred_region
      _
    $region9: #{tpu_custom_call.1} parent=1 // pred_fallthru
      _
    // Predicated region
    $region10: #{tpu_custom_call.1} parent=1 // pred_check
      _
    $region11: #{tpu_custom_call.1} parent=1 // pred_check_branch
      %20 = sbr.rel (0) target = $region13
    $region12: #{tpu_custom_call.1} parent=1 // pred_region
      _
    $region13: #{tpu_custom_call.1} parent=1 // pred_fallthru
      _
    // Predicated region
    $region14: #{tpu_custom_call.1} parent=1 // pred_check
      _
    $region15: #{tpu_custom_call.1} parent=1 // pred_check_branch
      %22 = sbr.rel (0) target = $region17
    $region16: #{tpu_custom_call.1} parent=1 // pred_region
      _
    $region17: #{tpu_custom_call.1} parent=1 // pred_fallthru
      _
    // Predicated region
    $region18: #{tpu_custom_call.1} parent=1 // pred_check
      _
    $region19: #{tpu_custom_call.1} parent=1 // pred_check_branch
      %24 = sbr.rel (0) target = $region21
    $region20: #{tpu_custom_call.1} parent=1 // pred_region
      _
    $region21: #{tpu_custom_call.1} parent=1 // pred_fallthru
      _
    // Predicated region
    $region22: #{tpu_custom_call.1} parent=1 // pred_check
      _
    $region23: #{tpu_custom_call.1} parent=1 // pred_check_branch
      %26 = sbr.rel (0) target = $region25
    $region24: #{tpu_custom_call.1} parent=1 // pred_region
      _
    $region25: #{tpu_custom_call.1} parent=1 // pred_fallthru
      _
    // Predicated region
    $region26: #{tpu_custom_call.1} parent=1 // pred_check
      _
    $region27: #{tpu_custom_call.1} parent=1 // pred_check_branch
      %28 = sbr.rel (0) target = $region29
    $region28: #{tpu_custom_call.1} parent=1 // pred_region
      _
    $region29: #{tpu_custom_call.1} parent=1 // pred_fallthru
      _
    // Predicated region
    $region30: #{tpu_custom_call.1} parent=1 // pred_check
      _
    $region31: #{tpu_custom_call.1} parent=1 // pred_check_branch
      %30 = sbr.rel (0) target = $region33
    $region32: #{tpu_custom_call.1} parent=1 // pred_region
      _
    $region33: #{tpu_custom_call.1} parent=1 // pred_fallthru
      _
    // Predicated region
    $region34: #{tpu_custom_call.1} parent=1 // pred_check
      _
    $region35: #{tpu_custom_call.1} parent=1 // pred_check_branch
      %32 = sbr.rel (0) target = $region37
    $region36: #{tpu_custom_call.1} parent=1 // pred_region
      _
    $region37: #{tpu_custom_call.1} parent=1 // pred_fallthru
      _
    %v34 = vld [vmem:[%s1] sm:$0xff]
    %v35 = vld [vmem:[%s1 + $0x8] sm:$0xff]
    %v36 = vld [vmem:[%s1 + $0x10] sm:$0xff]
    %v37 = vld [vmem:[%s1 + $0x18] sm:$0xff]
    %v38 = vpack.c.bf16 %v35, %v34
    %v39 = vpack.c.bf16 %v37, %v36
    %v40 = vld [vmem:[%s3] sm:$0xff]
    %v41 = vld [vmem:[%s3 + $0x8] sm:$0xff]
    %v42 = vld [vmem:[%s3 + $0x10] sm:$0xff]
    %v43 = vld [vmem:[%s3 + $0x18] sm:$0xff]
    %v44 = vpack.c.bf16 %v41, %v40
    %v45 = vpack.c.bf16 %v43, %v42
    %v46 = vld [vmem:[%s5] sm:$0xff]
    %v47 = vld [vmem:[%s5 + $0x8] sm:$0xff]
    %v48 = vld [vmem:[%s5 + $0x10] sm:$0xff]
    %v49 = vld [vmem:[%s5 + $0x18] sm:$0xff]
    %v50 = vpack.c.bf16 %v47, %v46
    %v51 = vpack.c.bf16 %v49, %v48
    %v52 = vld [vmem:[%s7] sm:$0xff]
    %v53 = vpack.c.bf16 %v52, %v52
    %v54 = vld [vmem:[%s2] sm:$0xff]
    %v55 = vld [vmem:[%s2 + $0x8] sm:$0xff]
    %v56 = vld [vmem:[%s2 + $0x10] sm:$0xff]
    %v57 = vld [vmem:[%s2 + $0x18] sm:$0xff]
    %59 = vset.pattern.permute.xlu0 0
    %60 = vperm.xlu0 %59, %v54
    %v61 = vpop.permute.xlu0 %60
    %64 = vset.pattern.permute.xlu0 0
    %65 = vperm.xlu0 %64, %v55
    %v66 = vpop.permute.xlu0 %65
    %69 = vset.pattern.permute.xlu0 0
    %70 = vperm.xlu0 %69, %v56
    %v71 = vpop.permute.xlu0 %70
    %74 = vset.pattern.permute.xlu0 0
    %75 = vperm.xlu0 %74, %v57
    %v76 = vpop.permute.xlu0 %75
    %v78 = vld [vmem:[%s4] sm:$0xff]
    %v79 = vld [vmem:[%s4 + $0x8] sm:$0xff]
    %v80 = vld [vmem:[%s4 + $0x10] sm:$0xff]
    %v81 = vld [vmem:[%s4 + $0x18] sm:$0xff]
    %83 = vset.pattern.permute.xlu0 0
    %84 = vperm.xlu0 %83, %v78
    %v85 = vpop.permute.xlu0 %84
    %88 = vset.pattern.permute.xlu0 0
    %89 = vperm.xlu0 %88, %v79
    %v90 = vpop.permute.xlu0 %89
    %93 = vset.pattern.permute.xlu0 0
    %94 = vperm.xlu0 %93, %v80
    %v95 = vpop.permute.xlu0 %94
    %98 = vset.pattern.permute.xlu0 0
    %99 = vperm.xlu0 %98, %v81
    %v100 = vpop.permute.xlu0 %99
    %v102 = vld [vmem:[%s6] sm:$0xff]
    %v103 = vld [vmem:[%s6 + $0x8] sm:$0xff]
    %v104 = vld [vmem:[%s6 + $0x10] sm:$0xff]
    %v105 = vld [vmem:[%s6 + $0x18] sm:$0xff]
    %107 = vset.pattern.permute.xlu0 0
    %108 = vperm.xlu0 %107, %v102
    %v109 = vpop.permute.xlu0 %108
    %112 = vset.pattern.permute.xlu0 0
    %113 = vperm.xlu0 %112, %v103
    %v114 = vpop.permute.xlu0 %113
    %117 = vset.pattern.permute.xlu0 0
    %118 = vperm.xlu0 %117, %v104
    %v119 = vpop.permute.xlu0 %118
    %122 = vset.pattern.permute.xlu0 0
    %123 = vperm.xlu0 %122, %v105
    %v124 = vpop.permute.xlu0 %123
    %v126 = vld [vmem:[%s8] sm:$0xff]
    %128 = vset.pattern.permute.xlu0 0
    %129 = vperm.xlu0 %128, %v126
    %v130 = vpop.permute.xlu0 %129
    %v132 = vld [vmem:[%s0] sm:$0xff]
    %v133 = vpack.c.bf16 %v132, %v132
    %vm134 = vcmask 64512
    %v136 = vsel %vm134, %v38, 0
    %v139 = vsel %vm134, %v39, 0
    %vm141 = vcmask 1043456
    %v143 = vsel %vm141, %v133, 0
    %145 = vmatprep.subr.bf16.mxu0 0
    %146 = vmatpush1.bf16.msra.mxu0 %v143
    %147 = vmatprep.subr.bf16.mxu0 0
    %148 = vmatpush1.bf16.msra.mxu0 0
    %149 = vmatprep.subr.bf16.mxu0 0
    %150 = vmatpush1.bf16.msra.mxu0 0
    %151 = vmatprep.subr.bf16.mxu0 0
    %152 = vmatpush1.bf16.msra.mxu0 0
    %153 = vmatprep.subr.bf16.mxu0 0
    %154 = vmatpush1.bf16.msra.mxu0 0
    %155 = vmatprep.subr.bf16.mxu0 0
    %156 = vmatpush1.bf16.msra.mxu0 0
    %157 = vmatprep.subr.bf16.mxu0 0
    %158 = vmatpush1.bf16.msra.mxu0 0
    %159 = vmatprep.subr.bf16.mxu0 0
    %160 = vmatpush1.bf16.msra.mxu0 0
    %161 = vmatprep.subr.bf16.mxu0 0
    %162 = vmatpush1.bf16.msra.mxu0 0
    %163 = vmatprep.subr.bf16.mxu0 0
    %164 = vmatpush1.bf16.msra.mxu0 0
    %165 = vmatprep.subr.bf16.mxu0 0
    %166 = vmatpush1.bf16.msra.mxu0 0
    %167 = vmatprep.subr.bf16.mxu0 0
    %168 = vmatpush1.bf16.msra.mxu0 0
    %169 = vmatprep.subr.bf16.mxu0 0
    %170 = vmatpush1.bf16.msra.mxu0 0
    %171 = vmatprep.subr.bf16.mxu0 0
    %172 = vmatpush1.bf16.msra.mxu0 0
    %173 = vmatprep.subr.bf16.mxu0 0
    %174 = vmatpush1.bf16.msra.mxu0 0
    %175 = vmatprep.subr.bf16.mxu0 0
    %176 = vmatpush1.bf16.msra.mxu0 0
    %177 = vmatprep.mubr.bf16.mxu0 0
    %178 = vmatmul.mubr.bf16.gmra.mrb[0].mxu0 %v136
    %v179 = vpop.f32.mrb[0].mxu0
    %v180 = vadd.f32 %v61, %v179
    %v181 = vpop.f32.mrb[0].mxu0
    %v182 = vpop.f32.mrb[0].mxu0
    %v183 = vadd.f32 %v66, %v182
    %v184 = vpop.f32.mrb[0].mxu0
    %185 = vmatprep.mubr.bf16.mxu0 0
    %186 = vmatmul.mubr.bf16.gmra.mrb[0].mxu0 %v139
    %v187 = vpop.f32.mrb[0].mxu0
    %v188 = vadd.f32 %v71, %v187
    %v189 = vpop.f32.mrb[0].mxu0
    %v190 = vpop.f32.mrb[0].mxu0
    %v191 = vadd.f32 %v76, %v190
    %v192 = vpop.f32.mrb[0].mxu0
    %193 = vdwg.mxu0
    %v194 = vmax.f32 %v180, 0.0
    %v195 = vmax.f32 %v183, 0.0
    %v196 = vmax.f32 %v188, 0.0
    %v197 = vmax.f32 %v191, 0.0
    %v198 = vpack.c.bf16 %v195, %v194
    %v199 = vpack.c.bf16 %v197, %v196
    %vm200 = vcmask 261120
    %v202 = vsel %vm200, %v44, 0
    %v205 = vsel %vm200, %v45, 0
    %207 = vmatprep.subr.bf16.mxu0 0
    %208 = vmatpush1.bf16.msra.mxu0 %v198
    %209 = vmatprep.subr.bf16.mxu0 0
    %210 = vmatpush1.bf16.msra.mxu0 %v199
    %211 = vmatprep.subr.bf16.mxu0 0
    %212 = vmatpush1.bf16.msra.mxu0 0
    %213 = vmatprep.subr.bf16.mxu0 0
    %214 = vmatpush1.bf16.msra.mxu0 0
    %215 = vmatprep.subr.bf16.mxu0 0
    %216 = vmatpush1.bf16.msra.mxu0 0
    %217 = vmatprep.subr.bf16.mxu0 0
    %218 = vmatpush1.bf16.msra.mxu0 0
    %219 = vmatprep.subr.bf16.mxu0 0
    %220 = vmatpush1.bf16.msra.mxu0 0
    %221 = vmatprep.subr.bf16.mxu0 0
    %222 = vmatpush1.bf16.msra.mxu0 0
    %223 = vmatprep.subr.bf16.mxu0 0
    %224 = vmatpush1.bf16.msra.mxu0 0
    %225 = vmatprep.subr.bf16.mxu0 0
    %226 = vmatpush1.bf16.msra.mxu0 0
    %227 = vmatprep.subr.bf16.mxu0 0
    %228 = vmatpush1.bf16.msra.mxu0 0
    %229 = vmatprep.subr.bf16.mxu0 0
    %230 = vmatpush1.bf16.msra.mxu0 0
    %231 = vmatprep.subr.bf16.mxu0 0
    %232 = vmatpush1.bf16.msra.mxu0 0
    %233 = vmatprep.subr.bf16.mxu0 0
    %234 = vmatpush1.bf16.msra.mxu0 0
    %235 = vmatprep.subr.bf16.mxu0 0
    %236 = vmatpush1.bf16.msra.mxu0 0
    %237 = vmatprep.subr.bf16.mxu0 0
    %238 = vmatpush1.bf16.msra.mxu0 0
    %239 = vmatprep.mubr.bf16.mxu0 0
    %240 = vmatmul.mubr.bf16.gmra.mrb[0].mxu0 %v202
    %v241 = vpop.f32.mrb[0].mxu0
    %v242 = vadd.f32 %v85, %v241
    %v243 = vpop.f32.mrb[0].mxu0
    %v244 = vpop.f32.mrb[0].mxu0
    %v245 = vadd.f32 %v90, %v244
    %v246 = vpop.f32.mrb[0].mxu0
    %247 = vmatprep.mubr.bf16.mxu0 0
    %248 = vmatmul.mubr.bf16.gmra.mrb[0].mxu0 %v205
    %v249 = vpop.f32.mrb[0].mxu0
    %v250 = vadd.f32 %v95, %v249
    %v251 = vpop.f32.mrb[0].mxu0
    %v252 = vpop.f32.mrb[0].mxu0
    %v253 = vadd.f32 %v100, %v252
    %v254 = vpop.f32.mrb[0].mxu0
    %255 = vdwg.mxu0
    %v256 = vmax.f32 %v242, 0.0
    %v257 = vmax.f32 %v245, 0.0
    %v258 = vmax.f32 %v250, 0.0
    %v259 = vmax.f32 %v253, 0.0
    %v260 = vadd.f32 %v256, %v194
    %v261 = vadd.f32 %v257, %v195
    %v262 = vadd.f32 %v258, %v196
    %v263 = vadd.f32 %v259, %v197
    %v264 = vpack.c.bf16 %v261, %v260
    %v265 = vpack.c.bf16 %v263, %v262
    %v267 = vsel %vm200, %v50, 0
    %v270 = vsel %vm200, %v51, 0
    %272 = vmatprep.subr.bf16.mxu0 0
    %273 = vmatpush1.bf16.msra.mxu0 %v264
    %274 = vmatprep.subr.bf16.mxu0 0
    %275 = vmatpush1.bf16.msra.mxu0 %v265
    %276 = vmatprep.subr.bf16.mxu0 0
    %277 = vmatpush1.bf16.msra.mxu0 0
    %278 = vmatprep.subr.bf16.mxu0 0
    %279 = vmatpush1.bf16.msra.mxu0 0
    %280 = vmatprep.subr.bf16.mxu0 0
    %281 = vmatpush1.bf16.msra.mxu0 0
    %282 = vmatprep.subr.bf16.mxu0 0
    %283 = vmatpush1.bf16.msra.mxu0 0
    %284 = vmatprep.subr.bf16.mxu0 0
    %285 = vmatpush1.bf16.msra.mxu0 0
    %286 = vmatprep.subr.bf16.mxu0 0
    %287 = vmatpush1.bf16.msra.mxu0 0
    %288 = vmatprep.subr.bf16.mxu0 0
    %289 = vmatpush1.bf16.msra.mxu0 0
    %290 = vmatprep.subr.bf16.mxu0 0
    %291 = vmatpush1.bf16.msra.mxu0 0
    %292 = vmatprep.subr.bf16.mxu0 0
    %293 = vmatpush1.bf16.msra.mxu0 0
    %294 = vmatprep.subr.bf16.mxu0 0
    %295 = vmatpush1.bf16.msra.mxu0 0
    %296 = vmatprep.subr.bf16.mxu0 0
    %297 = vmatpush1.bf16.msra.mxu0 0
    %298 = vmatprep.subr.bf16.mxu0 0
    %299 = vmatpush1.bf16.msra.mxu0 0
    %300 = vmatprep.subr.bf16.mxu0 0
    %301 = vmatpush1.bf16.msra.mxu0 0
    %302 = vmatprep.subr.bf16.mxu0 0
    %303 = vmatpush1.bf16.msra.mxu0 0
    %304 = vmatprep.mubr.bf16.mxu0 0
    %305 = vmatmul.mubr.bf16.gmra.mrb[0].mxu0 %v267
    %v306 = vpop.f32.mrb[0].mxu0
    %v307 = vadd.f32 %v109, %v306
    %v308 = vpop.f32.mrb[0].mxu0
    %v309 = vpop.f32.mrb[0].mxu0
    %v310 = vadd.f32 %v114, %v309
    %v311 = vpop.f32.mrb[0].mxu0
    %312 = vmatprep.mubr.bf16.mxu0 0
    %313 = vmatmul.mubr.bf16.gmra.mrb[0].mxu0 %v270
    %v314 = vpop.f32.mrb[0].mxu0
    %v315 = vadd.f32 %v119, %v314
    %v316 = vpop.f32.mrb[0].mxu0
    %v317 = vpop.f32.mrb[0].mxu0
    %v318 = vadd.f32 %v124, %v317
    %v319 = vpop.f32.mrb[0].mxu0
    %320 = vdwg.mxu0
    %v321 = vmax.f32 %v307, 0.0
    %v322 = vmax.f32 %v310, 0.0
    %v323 = vmax.f32 %v315, 0.0
    %v324 = vmax.f32 %v318, 0.0
    %v325 = vadd.f32 %v321, %v260
    %v326 = vadd.f32 %v322, %v261
    %v327 = vadd.f32 %v323, %v262
    %v328 = vadd.f32 %v324, %v263
    %v329 = vpack.c.bf16 %v326, %v325
    %v330 = vpack.c.bf16 %v328, %v327
    %v332 = vsel %vm200, %v53, 0
    %334 = vmatprep.subr.bf16.mxu0 0
    %335 = vmatpush1.bf16.msra.mxu0 %v329
    %336 = vmatprep.subr.bf16.mxu0 0
    %337 = vmatpush1.bf16.msra.mxu0 %v330
    %338 = vmatprep.subr.bf16.mxu0 0
    %339 = vmatpush1.bf16.msra.mxu0 0
    %340 = vmatprep.subr.bf16.mxu0 0
    %341 = vmatpush1.bf16.msra.mxu0 0
    %342 = vmatprep.subr.bf16.mxu0 0
    %343 = vmatpush1.bf16.msra.mxu0 0
    %344 = vmatprep.subr.bf16.mxu0 0
    %345 = vmatpush1.bf16.msra.mxu0 0
    %346 = vmatprep.subr.bf16.mxu0 0
    %347 = vmatpush1.bf16.msra.mxu0 0
    %348 = vmatprep.subr.bf16.mxu0 0
    %349 = vmatpush1.bf16.msra.mxu0 0
    %350 = vmatprep.subr.bf16.mxu0 0
    %351 = vmatpush1.bf16.msra.mxu0 0
    %352 = vmatprep.subr.bf16.mxu0 0
    %353 = vmatpush1.bf16.msra.mxu0 0
    %354 = vmatprep.subr.bf16.mxu0 0
    %355 = vmatpush1.bf16.msra.mxu0 0
    %356 = vmatprep.subr.bf16.mxu0 0
    %357 = vmatpush1.bf16.msra.mxu0 0
    %358 = vmatprep.subr.bf16.mxu0 0
    %359 = vmatpush1.bf16.msra.mxu0 0
    %360 = vmatprep.subr.bf16.mxu0 0
    %361 = vmatpush1.bf16.msra.mxu0 0
    %362 = vmatprep.subr.bf16.mxu0 0
    %363 = vmatpush1.bf16.msra.mxu0 0
    %364 = vmatprep.subr.bf16.mxu0 0
    %365 = vmatpush1.bf16.msra.mxu0 0
    %366 = vmatprep.mubr.bf16.mxu0 0
    %367 = vmatmul.mubr.bf16.gmra.mrb[0].mxu0 %v332
    %v368 = vpop.f32.mrb[0].mxu0
    %v369 = vadd.f32 %v130, %v368
    %v370 = vpop.f32.mrb[0].mxu0
    %v371 = vpop.f32.mrb[0].mxu0
    %v372 = vpop.f32.mrb[0].mxu0
    %373 = vdwg.mxu0
    %374 = vst [vmem:[#allocation2] sm:$0xff] %v369
    // Predicated region
    $region38: #{tpu_custom_call.1} parent=1 // pred_check
      _
    $region39: #{tpu_custom_call.1} parent=1 // pred_check_branch
      %376 = sbr.rel (0) target = $region41
    $region40: #{tpu_custom_call.1} parent=1 // pred_region
      %s378 = ssub.s32 128, 128
      %379 = vsyncadd [#allocation3], %s378
      %s381 = sshll.u32 [#allocation2], 4
      %s382 = int_to_ptr.vmem [resolvable:$true] %s381
      %384 = dma.vmem_to_hbm [thread:$0]  %s382, 128, %s9, [#allocation3]
    $region41: #{tpu_custom_call.1} parent=1 // pred_fallthru
      _
    // Predicated region
    $region42: #{tpu_custom_call.1} parent=1 // pred_check
      _
    $region43: #{tpu_custom_call.1} parent=1 // pred_check_branch
      %386 = sbr.rel (0) target = $region45
    $region44: #{tpu_custom_call.1} parent=1 // pred_region
      %387 = dma.done [#allocation3], 128
    $region45: #{tpu_custom_call.1} parent=1 // pred_fallthru
      _
    %388 = vsyncpa [#allocation3], 1

</llo_original>
